<compile_context>
chip_gen: v5e
topology: v5e:2x2
jax: 0.10.0
libtpu: 0.0.40
codegen_flags: <defaults>
</compile_context>

<pallas_src>
import functools

import jax
import jax.numpy as jnp
from jax.experimental import pallas as pl
from jax.experimental.pallas import tpu as pltpu


def _round_up(v, m):
    return ((v + m - 1) // m) * m


def _cdiv(a, b):
    return (a + b - 1) // b


def _head_kernel(x_ref, w1_ref, b1_ref, w2_ref, o_ref, acc_ref):
    """One column-tile step: h = tanh(x @ W1_n + b1_n); acc += h @ W2_n."""
    n = pl.program_id(1)

    @pl.when(n == 0)
    def _init():
        acc_ref[...] = jnp.zeros_like(acc_ref)

    # First matmul: bf16 x bf16 on the MXU, f32 accumulation.
    h = jnp.dot(x_ref[...], w1_ref[...], preferred_element_type=jnp.float32)
    h = jnp.tanh(h + b1_ref[...])          # bias add (VPU) + tanh (EUP), f32

    # Second matmul kept in f32 (memory-bound kernel -> accuracy is free).
    acc_ref[...] += jnp.dot(h, w2_ref[...], preferred_element_type=jnp.float32)

    @pl.when(n == pl.num_programs(1) - 1)
    def _finalize():
        o_ref[...] = acc_ref[...]          # per-split f32 partial (bias added outside)


def prepare_triplet_head_params(
    w1, b1, w2, b2, *, compute_dtype=jnp.bfloat16, tile_n=1536, max_core_splits=2
):
    """One-time cast/pad of the head parameters (hoisted out of the hot path).

    Returns ((w1_p, b1_p, w2_p, b2_f32), meta) where meta holds the static
    tiling choices to pass to `bert_triplet_classification_head`.
    """
    H3 = w1.shape[0]
    assert w1.shape == (H3, H3), "dense weight must be [3H, 3H]"
    L = w2.shape[1]
    LANE = 128

    Lp = max(LANE, _round_up(L, LANE))            # lane-dense output columns

    if H3 <= _round_up(tile_n, LANE):
        # Single full-width tile (full-dim blocks are exempt from the 128 rule).
        TN, n_tiles, n_splits = H3, 1, 1
    else:
        n_splits = max(1, int(max_core_splits))
        n_tiles = _cdiv(H3, _round_up(tile_n, LANE))
        n_tiles = _round_up(n_tiles, n_splits)     # even per-core split
        TN = _round_up(_cdiv(H3, n_tiles), LANE)   # 128-aligned, minimal padding
    H3n = n_tiles * TN

    cdt = compute_dtype
    # Zero-padded W1 columns + zero b1 entries give h_pad = tanh(0) = 0 and the
    # matching W2 rows are zero too, so padding contributes nothing.
    if H3n == H3:
        w1_p = w1.astype(cdt)
        b1_p = b1.astype(jnp.float32).reshape(1, H3)
    else:
        w1_p = jnp.zeros((H3, H3n), cdt).at[:, :H3].set(w1.astype(cdt))
        b1_p = (
            jnp.zeros((1, H3n), jnp.float32)
            .at[:, :H3]
            .set(b1.astype(jnp.float32).reshape(1, H3))
        )
    if (H3n, Lp) == (H3, L):
        w2_p = w2.astype(jnp.float32)
    else:
        w2_p = jnp.zeros((H3n, Lp), jnp.float32).at[:H3, :L].set(w2.astype(jnp.float32))
    b2_f = b2.astype(jnp.float32)

    meta = dict(tile_n=TN, num_splits=n_splits)
    return (w1_p, b1_p, w2_p, b2_f), meta


def bert_triplet_classification_head(
    features, positions, w1_p, b1_p, w2_p, b2, *, tile_n, num_splits
):
    """features:[B,S,H], positions:[B,3] int32 -> logits [B, num_labels]."""
    B, S, H = features.shape
    H3 = 3 * H
    H3n = w1_p.shape[1]
    Lp = w2_p.shape[1]
    L = b2.shape[0]
    TN = tile_n
    n_splits = num_splits
    tiles_per_split = H3n // (TN * n_splits)
    assert TN * n_splits * tiles_per_split == H3n

    cdt = w1_p.dtype
    out_dtype = features.dtype

    # ---- token gather (tiny: B*3*H elems), equivalent to torch.gather ----
    # TODO(synk): fuse the gather into the kernel with scalar-prefetched
    # positions + pl.Element row specs; its traffic is negligible vs W1.
    gathered = jnp.take_along_axis(features, positions[:, :, None], axis=1)  # [B,3,H]
    x = gathered.reshape(B, H3)
    # Dropout: identity at inference time -> nothing to emit.

    # Pad batch to a sublane multiple so stores are unmasked; slice back later.
    SUB = 8
    Bp = _round_up(max(B, SUB), SUB)
    x_pad = jnp.zeros((Bp, H3), cdt).at[:B].set(x.astype(cdt))

    # ---- cost / VMEM hints ----
    bpe_c = jnp.dtype(cdt).itemsize
    cost = pl.CostEstimate(
        flops=2 * Bp * H3 * H3n + 2 * Bp * H3n * Lp,
        transcendentals=Bp * H3n,
        bytes_accessed=(Bp * H3 + H3 * H3n) * bpe_c
        + (H3n + H3n * Lp) * 4
        + n_splits * Bp * Lp * 4,
    )
    working = (
        2 * H3 * TN * bpe_c        # double-buffered W1 tiles (dominant)
        + 2 * TN * Lp * 4          # W2 tiles (f32)
        + 2 * TN * 4               # b1 tiles
        + 2 * Bp * H3 * bpe_c      # resident x (constant index, still 2 bufs)
        + 2 * Bp * Lp * 4          # output block
        + Bp * Lp * 4              # f32 accumulator
    )
    # Cap at 40 MiB so larger tiles still leave headroom on v7x (64 MiB VMEM).
    vmem_limit = int(min(max(int(working * 1.5), 16 << 20), 40 << 20))

    def w1_map(c, n):
        return (0, c * tiles_per_split + n)

    def w2_map(c, n):
        return (c * tiles_per_split + n, 0)

    grid_spec = pltpu.PrefetchScalarGridSpec(
        num_scalar_prefetch=0,
        grid=(n_splits, tiles_per_split),
        in_specs=[
            # NOTE: x/b-style constant-index inputs could use Buffered(1) to
            # drop the second buffer, but their footprint here is negligible.
            pl.BlockSpec((Bp, H3), lambda c, n: (0, 0)),   # x: resident
            pl.BlockSpec((H3, TN), w1_map),                # W1: stream column tiles
            pl.BlockSpec((1, TN), w1_map),                 # b1: stream with W1
            pl.BlockSpec((TN, Lp), w2_map),                # W2: matching row tiles
        ],
        out_specs=pl.BlockSpec((None, Bp, Lp), lambda c, n: (c, 0, 0)),
        scratch_shapes=[pltpu.VMEM((Bp, Lp), jnp.float32)],
    )

    partials = pl.pallas_call(
        _head_kernel,
        out_shape=jax.ShapeDtypeStruct((n_splits, Bp, Lp), jnp.float32),
        grid_spec=grid_spec,
        compiler_params=pltpu.CompilerParams(
            # Leading axis: independent partials (sharded across TCs on v7x);
            # inner axis: the column-block reduction (output revisited).
            dimension_semantics=("parallel", "arbitrary"),
            vmem_limit_bytes=vmem_limit,
        ),
        cost_estimate=cost,
    )(x_pad, w1_p, b1_p, w2_p)

    out = partials.sum(axis=0)[:B, :L] + b2
    return out.astype(out_dtype)


if __name__ == "__main__":
    # Small config: hidden_size=32 -> 3H=96, seq=8, batch=2, num_labels=4.
    B, S, H, L = 2, 8, 32, 4
    H3 = 3 * H

    key = jax.random.PRNGKey(0)
    k_feat, k_w1, k_b1, k_w2, k_b2 = jax.random.split(key, 5)

    features = jax.random.normal(k_feat, (B, S, H), dtype=jnp.float32)
    positions = jnp.array([[0, 2, 5], [1, 3, 7]], dtype=jnp.int32)

    # Deterministic synthetic parameters (nn.Linear-like scaling).
    w1 = jax.random.normal(k_w1, (H3, H3), dtype=jnp.float32) * 0.02
    b1 = jax.random.normal(k_b1, (H3,), dtype=jnp.float32) * 0.02
    w2 = jax.random.normal(k_w2, (H3, L), dtype=jnp.float32) * 0.02
    b2 = jax.random.normal(k_b2, (L,), dtype=jnp.float32) * 0.02

    # One-time parameter prep (cast/pad hoisted out of the per-call path).
    params, meta = prepare_triplet_head_params(
        w1, b1, w2, b2, compute_dtype=jnp.bfloat16, tile_n=1536
    )
    params = jax.block_until_ready(params)
    w1_p, b1_p, w2_p, b2_p = params

    run = jax.jit(functools.partial(bert_triplet_classification_head, **meta))
    logits = jax.block_until_ready(run(features, positions, w1_p, b1_p, w2_p, b2_p))

    # Reference in plain JAX (fp32).  x/W1 go through bf16 on the MXU
    # (f32 accumulation) -> loosen the tolerance accordingly.
    x_ref = jnp.take_along_axis(features, positions[:, :, None], axis=1).reshape(B, H3)
    ref = jnp.tanh(x_ref @ w1 + b1) @ w2 + b2
    assert logits.shape == (B, L)
    assert jnp.allclose(logits, ref, atol=2e-2, rtol=2e-2), "mismatch vs reference"

    print("KERNEL_OK")
</pallas_src>

<mosaic_0001>
module attributes {stable_mosaic.version = 11 : i64} {
  func.func @_head_kernel(%arg0: i32, %arg1: i32, %arg2: memref<8x96xbf16, #tpu.memory_space<vmem>>, %arg3: memref<96x96xbf16, #tpu.memory_space<vmem>>, %arg4: memref<1x96xf32, #tpu.memory_space<vmem>>, %arg5: memref<96x128xf32, #tpu.memory_space<vmem>>, %arg6: memref<1x8x128xf32, #tpu.memory_space<vmem>>, %arg7: memref<8x128xf32, #tpu.memory_space<vmem>>) attributes {dimension_semantics = [#tpu.dimension_semantics<parallel>, #tpu.dimension_semantics<arbitrary>], iteration_bounds = array<i64: 1, 1>, scalar_prefetch = 0 : i64, scratch_operands = 1 : i64, tpu.core_type = #tpu.core_type<tc>, window_params = [{pipeline_mode = #tpu.pipeline_mode<synchronous>, transform_indices = @transform_0, window_bounds = array<i64: 8, 96>}, {transform_indices = @transform_1, window_bounds = array<i64: 96, 96>}, {transform_indices = @transform_2, window_bounds = array<i64: 1, 96>}, {transform_indices = @transform_3, window_bounds = array<i64: 96, 128>}, {transform_indices = @transform_4, window_bounds = array<i64: 1, 8, 128>}]} {
    %c0_i32 = arith.constant 0 : i32
    %0 = arith.cmpi eq, %arg1, %c0_i32 : i32
    %1 = arith.extui %0 : i1 to i32
    %c0_i32_0 = arith.constant 0 : i32
    %2 = arith.cmpi ne, %1, %c0_i32_0 : i32
    scf.if %2 {
      %cst_15 = arith.constant 0.000000e+00 : f32
      %18 = vector.broadcast %cst_15 : f32 to vector<8x128xf32>
      %c0_16 = arith.constant 0 : index
      %c0_17 = arith.constant 0 : index
      %19 = vector.load %arg7[%c0_16, %c0_17] : memref<8x128xf32, #tpu.memory_space<vmem>>, vector<8x128xf32>
      tpu.vector_store %arg7[%c0_16, %c0_17], %18 {strides = array<i32>} : memref<8x128xf32, #tpu.memory_space<vmem>>, vector<8x128xf32>,
    } else {
    }
    %c0 = arith.constant 0 : index
    %c0_1 = arith.constant 0 : index
    %3 = vector.load %arg2[%c0, %c0_1] : memref<8x96xbf16, #tpu.memory_space<vmem>>, vector<8x96xbf16>
    %c0_2 = arith.constant 0 : index
    %c0_3 = arith.constant 0 : index
    %4 = vector.load %arg3[%c0_2, %c0_3] : memref<96x96xbf16, #tpu.memory_space<vmem>>, vector<96x96xbf16>
    %cst = arith.constant dense<0.000000e+00> : vector<8x96xf32>
    %5 = tpu.matmul %3, %4, %cst {dimension_numbers = #tpu.dot_dimension_numbers<[1], [0], [0], [1], [0, 0, 1, 1], [], []>} : vector<8x96xbf16>, vector<96x96xbf16>, vector<8x96xf32> -> vector<8x96xf32>
    %c0_4 = arith.constant 0 : index
    %c0_5 = arith.constant 0 : index
    %6 = vector.load %arg4[%c0_4, %c0_5] : memref<1x96xf32, #tpu.memory_space<vmem>>, vector<1x96xf32>
    %7 = vector.broadcast %6 : vector<1x96xf32> to vector<8x96xf32>
    %8 = arith.addf %5, %7 : vector<8x96xf32>
    %9 = math.tanh %8 : vector<8x96xf32>
    %c0_6 = arith.constant 0 : index
    %c0_7 = arith.constant 0 : index
    %10 = vector.load %arg7[%c0_6, %c0_7] : memref<8x128xf32, #tpu.memory_space<vmem>>, vector<8x128xf32>
    %c0_8 = arith.constant 0 : index
    %c0_9 = arith.constant 0 : index
    %11 = vector.load %arg5[%c0_8, %c0_9] : memref<96x128xf32, #tpu.memory_space<vmem>>, vector<96x128xf32>
    %cst_10 = arith.constant dense<0.000000e+00> : vector<8x128xf32>
    %12 = tpu.matmul %9, %11, %cst_10 {dimension_numbers = #tpu.dot_dimension_numbers<[1], [0], [0], [1], [0, 0, 1, 1], [], []>} : vector<8x96xf32>, vector<96x128xf32>, vector<8x128xf32> -> vector<8x128xf32>
    %13 = arith.addf %10, %12 : vector<8x128xf32>
    %c0_11 = arith.constant 0 : index
    %c0_12 = arith.constant 0 : index
    %14 = vector.load %arg7[%c0_11, %c0_12] : memref<8x128xf32, #tpu.memory_space<vmem>>, vector<8x128xf32>
    tpu.vector_store %arg7[%c0_11, %c0_12], %13 {strides = array<i32>} : memref<8x128xf32, #tpu.memory_space<vmem>>, vector<8x128xf32>,
    %c0_i32_13 = arith.constant 0 : i32
    %15 = arith.cmpi eq, %arg1, %c0_i32_13 : i32
    %16 = arith.extui %15 : i1 to i32
    %c0_i32_14 = arith.constant 0 : i32
    %17 = arith.cmpi ne, %16, %c0_i32_14 : i32
    scf.if %17 {
      %c0_15 = arith.constant 0 : index
      %c0_16 = arith.constant 0 : index
      %18 = vector.load %arg7[%c0_15, %c0_16] : memref<8x128xf32, #tpu.memory_space<vmem>>, vector<8x128xf32>
      %c0_17 = arith.constant 0 : index
      %c0_18 = arith.constant 0 : index
      %c0_19 = arith.constant 0 : index
      %19 = vector.load %arg6[%c0_17, %c0_18, %c0_19] : memref<1x8x128xf32, #tpu.memory_space<vmem>>, vector<1x8x128xf32>
      %20 = vector.shape_cast %19 : vector<1x8x128xf32> to vector<8x128xf32>
      %21 = vector.shape_cast %18 : vector<8x128xf32> to vector<1x8x128xf32>
      tpu.vector_store %arg6[%c0_17, %c0_18, %c0_19], %21 {strides = array<i32>} : memref<1x8x128xf32, #tpu.memory_space<vmem>>, vector<1x8x128xf32>,
    } else {
    }
    return
  }
  func.func @transform_0(%arg0: i32, %arg1: i32) -> (i32, i32) {
    %c0_i32 = arith.constant 0 : i32
    %c0_i32_0 = arith.constant 0 : i32
    %c0_i32_1 = arith.constant 0 : i32
    return %c0_i32, %c0_i32_0 : i32, i32
  }
  func.func @transform_1(%arg0: i32, %arg1: i32) -> (i32, i32) {
    %c1_i32 = arith.constant 1 : i32
    %0 = arith.muli %arg0, %c1_i32 : i32
    %1 = arith.addi %0, %arg1 : i32
    %c0_i32 = arith.constant 0 : i32
    %c0_i32_0 = arith.constant 0 : i32
    return %c0_i32, %1 : i32, i32
  }
  func.func @transform_2(%arg0: i32, %arg1: i32) -> (i32, i32) {
    %c1_i32 = arith.constant 1 : i32
    %0 = arith.muli %arg0, %c1_i32 : i32
    %1 = arith.addi %0, %arg1 : i32
    %c0_i32 = arith.constant 0 : i32
    %c0_i32_0 = arith.constant 0 : i32
    return %c0_i32, %1 : i32, i32
  }
  func.func @transform_3(%arg0: i32, %arg1: i32) -> (i32, i32) {
    %c1_i32 = arith.constant 1 : i32
    %0 = arith.muli %arg0, %c1_i32 : i32
    %1 = arith.addi %0, %arg1 : i32
    %c0_i32 = arith.constant 0 : i32
    %c0_i32_0 = arith.constant 0 : i32
    return %1, %c0_i32 : i32, i32
  }
  func.func @transform_4(%arg0: i32, %arg1: i32) -> (i32, i32, i32) {
    %c0_i32 = arith.constant 0 : i32
    %c0_i32_0 = arith.constant 0 : i32
    %c0_i32_1 = arith.constant 0 : i32
    return %arg0, %c0_i32, %c0_i32_0 : i32, i32, i32
  }
}

</mosaic_0001>

<llo_original>
// kernel: bert_triplet_classification_head.1
$region0: #{bert_triplet_classification_head.1}
  #allocation0 [shape = 'u32[]', space=smem, size = 0x4, offset = 0x4, fixed_abs, tag = 'smem constant byte address 0x4 - core index']
  #allocation1 [shape = 'u32[72,128]{1,0:T(1,128)}', space=vmem, size = 0x9000, scoped, tag = 'internal scratch']
  #allocation2 [shape = 'f32[8,128]{1,0:T(8,128)}', space=vmem, size = 0x1000, scoped, tag = 'scratch operand']
  %s0 = inlined_call_operand.vmem [shape: bf16[8,96], index: 0, kind: input, shape index: {}]
  %s1 = inlined_call_operand.vmem [shape: bf16[96,96], index: 1, kind: input, shape index: {}]
  %s2 = inlined_call_operand.vmem [shape: f32[1,96], index: 2, kind: input, shape index: {}]
  %s3 = inlined_call_operand.hbm [shape: f32[96,128], index: 3, kind: input, shape index: {}]
  %s4 = inlined_call_operand.vmem [shape: f32[1,8,128], index: 4, kind: output, shape index: {}]
  %s5 = sld [smem:[#allocation0]]
  $region38: #{bert_triplet_classification_head.1} parent=0
    _
  %s7 = ssub.s32 1, %s5
  %s8 = scalar_select 0, %s7, %s5
  $region1: #{bert_triplet_classification_head.1} parent=0
    #allocation3 [shape = 'u8[49152]{0}', space=vmem, size = 0xc000, scoped, tag = 'input window, operand 3, single buffered']
    #allocation4 [shape = 's32[1]{0}', space=sflag, size = 0x4, scoped, tag = 'scoped memory for bert_triplet_classification_head.1']
    %9 = vsyncpa [#allocation4], 0
    // Predicated region
    $region2: #{bert_triplet_classification_head.1} parent=1 // pred_check
      _
    $region3: #{bert_triplet_classification_head.1} parent=1 // pred_check_branch
      %11 = sbr.rel (0) target = $region5
    $region4: #{bert_triplet_classification_head.1} parent=1 // pred_region
      _
    $region5: #{bert_triplet_classification_head.1} parent=1 // pred_fallthru
      _
    // Predicated region
    $region6: #{bert_triplet_classification_head.1} parent=1 // pred_check
      _
    $region7: #{bert_triplet_classification_head.1} parent=1 // pred_check_branch
      %13 = sbr.rel (0) target = $region9
    $region8: #{bert_triplet_classification_head.1} parent=1 // pred_region
      %s14 = sadd.s32 0, 0
      %p15 = scmp.lt.s32.totalorder %s14, 0
      %s16 = scalar_select %p15, %s14, 0
      %s17 = smul.addr %s16, 4
      %s18 = scalar_lea.vmem %s1, %s17
      %s19 = sadd.s32 0, 0
    $region9: #{bert_triplet_classification_head.1} parent=1 // pred_fallthru
      _
    // Predicated region
    $region10: #{bert_triplet_classification_head.1} parent=1 // pred_check
      _
    $region11: #{bert_triplet_classification_head.1} parent=1 // pred_check_branch
      %21 = sbr.rel (0) target = $region13
    $region12: #{bert_triplet_classification_head.1} parent=1 // pred_region
      %s22 = sadd.s32 0, 0
      %p23 = scmp.lt.s32.totalorder %s22, 0
      %s24 = scalar_select %p23, %s22, 0
      %s25 = scalar_lea.vmem %s2, %s24
      %s26 = sadd.s32 0, 0
    $region13: #{bert_triplet_classification_head.1} parent=1 // pred_fallthru
      _
    // Predicated region
    $region14: #{bert_triplet_classification_head.1} parent=1 // pred_check
      _
    $region15: #{bert_triplet_classification_head.1} parent=1 // pred_check_branch
      %28 = sbr.rel (0) target = $region17
    $region16: #{bert_triplet_classification_head.1} parent=1 // pred_region
      %s29 = sadd.s32 0, 0
      %s30 = smul.u32 12, %s29
      %32 = vsyncadd [#allocation4], 0
      %s33 = smul.addr %s30, 8
      %s34 = scalar_lea.hbm %s3, %s33
      %s35 = sshll.u32 %s34, 4
      %s36 = int_to_ptr.hbm [resolvable:$true] %s35
      %s37 = sshll.u32 [#allocation3], 4
      %s38 = int_to_ptr.vmem [resolvable:$true] %s37
      %43 = dma.hbm_to_vmem [thread:$0]  %s36, 1536, %s38, [#allocation4], 128, 128, 8
    $region17: #{bert_triplet_classification_head.1} parent=1 // pred_fallthru
      _
    // Predicated region
    $region18: #{bert_triplet_classification_head.1} parent=1 // pred_check
      _
    $region19: #{bert_triplet_classification_head.1} parent=1 // pred_check_branch
      %45 = sbr.rel (0) target = $region21
    $region20: #{bert_triplet_classification_head.1} parent=1 // pred_region
      %47 = dma.done [#allocation4], 1536
    $region21: #{bert_triplet_classification_head.1} parent=1 // pred_fallthru
      _
    %s48 = sadd.s32 0, 0
    %p49 = scmp.lt.s32.totalorder %s48, 0
    %s50 = scalar_select %p49, %s48, 0
    %s51 = smul.addr %s50, 4
    %s52 = scalar_lea.vmem %s1, %s51
    %s53 = sadd.s32 0, 0
    %p54 = scmp.lt.s32.totalorder %s53, 0
    %s55 = scalar_select %p54, %s53, 0
    %s56 = scalar_lea.vmem %s2, %s55
    %s57 = sadd.s32 0, 0
    %p58 = scmp.lt.s32.totalorder %s57, 0
    %s59 = scalar_select %p58, %s57, 0
    %s60 = smul.addr %s59, 4
    %s61 = scalar_lea.vmem %s1, %s60
    %s62 = sadd.s32 0, 0
    %s63 = sadd.s32 0, 0
    %p64 = scmp.lt.s32.totalorder %s63, 0
    %s65 = scalar_select %p64, %s63, 0
    %s66 = scalar_lea.vmem %s2, %s65
    %s67 = sadd.s32 0, 0
    %s68 = sadd.s32 0, 0
    %s69 = smul.u32 12, %s68
    %p71 = scmp.eq.s32.totalorder 0, 0
    // Predicated region
    $region22: #{bert_triplet_classification_head.1} parent=1 // pred_check
      %p72 = pneg %p71
    $region23: #{bert_triplet_classification_head.1} parent=1 // pred_check_branch
      %74 = sbr.rel (%p72) target = $region25
    $region24: #{bert_triplet_classification_head.1} parent=1 // pred_region
      %75 = vst [vmem:[#allocation2] sm:$0xff] 0.0
    $region25: #{bert_triplet_classification_head.1} parent=1 // pred_fallthru
      _
    %v76 = vld [vmem:[%s0] sm:$0xf]
    %v77 = vld [vmem:[%s61] sm:$0xf]
    %v78 = vld [vmem:[%s61 + $0x4] sm:$0xf]
    %v79 = vld [vmem:[%s61 + $0x8] sm:$0xf]
    %v80 = vld [vmem:[%s61 + $0xc] sm:$0xf]
    %v81 = vld [vmem:[%s61 + $0x10] sm:$0xf]
    %v82 = vld [vmem:[%s61 + $0x14] sm:$0xf]
    %v83 = vld [vmem:[%s61 + $0x18] sm:$0xf]
    %v84 = vld [vmem:[%s61 + $0x1c] sm:$0xf]
    %v85 = vld [vmem:[%s61 + $0x20] sm:$0xf]
    %v86 = vld [vmem:[%s61 + $0x24] sm:$0xf]
    %v87 = vld [vmem:[%s61 + $0x28] sm:$0xf]
    %v88 = vld [vmem:[%s61 + $0x2c] sm:$0xf]
    %v89 = vld [vmem:[%s66] sm:$0x1]
    %v91 = vperm.slane %v89, 0
    %v105 = vunpack.c.l.b16 %v77
    %v106 = vunpack.c.l.b16 %v78
    %v107 = vunpack.c.l.b16 %v79
    %v108 = vunpack.c.l.b16 %v80
    %v109 = vunpack.c.l.b16 %v81
    %v110 = vunpack.c.l.b16 %v82
    %v111 = vunpack.c.l.b16 %v83
    %v112 = vunpack.c.l.b16 %v84
    %v113 = vunpack.c.l.b16 %v85
    %v114 = vunpack.c.l.b16 %v86
    %v115 = vunpack.c.l.b16 %v87
    %v116 = vunpack.c.l.b16 %v88
    %v117 = vpack.c.b16 %v106, %v105
    %v118 = vpack.c.b16 %v108, %v107
    %v119 = vpack.c.b16 %v110, %v109
    %v120 = vpack.c.b16 %v112, %v111
    %v121 = vpack.c.b16 %v114, %v113
    %v122 = vpack.c.b16 %v116, %v115
    %vm129 = vcmask 785408
    %v131 = vsel %vm129, %v76, 0
    %133 = vmatpush.bf16.msra.mxu0 0
    %134 = vmatpush.bf16.msra.mxu0 0
    %135 = vmatpush.bf16.msra.mxu0 %v122
    %136 = vmatpush.bf16.msra.mxu0 %v121
    %137 = vmatpush.bf16.msra.mxu0 %v120
    %138 = vmatpush.bf16.msra.mxu0 %v119
    %139 = vmatpush.bf16.msra.mxu0 %v118
    %140 = vmatpush.bf16.msra.mxu0 %v117
    %141 = vmatmul.bf16.gmra.mxu0 %v131
    %v142 = vpop.f32.mrf.mxu0
    %v143 = vadd.f32 %v91, %v142
    %v144 = vpop.f32.mrf.mxu0
    %145 = vdwg.mxu0
    %v146 = vtanh.pop %v143
    %v147 = vld [vmem:[#allocation2] sm:$0xff]
    %v148 = vld [vmem:[#allocation3] sm:$0xff]
    %v149 = vld [vmem:[#allocation3 + $0x8] sm:$0xff]
    %v150 = vld [vmem:[#allocation3 + $0x10] sm:$0xff]
    %v151 = vld [vmem:[#allocation3 + $0x18] sm:$0xff]
    %v152 = vld [vmem:[#allocation3 + $0x20] sm:$0xff]
    %v153 = vld [vmem:[#allocation3 + $0x28] sm:$0xff]
    %v154 = vld [vmem:[#allocation3 + $0x30] sm:$0xff]
    %v155 = vld [vmem:[#allocation3 + $0x38] sm:$0xff]
    %v156 = vld [vmem:[#allocation3 + $0x40] sm:$0xff]
    %v157 = vld [vmem:[#allocation3 + $0x48] sm:$0xff]
    %v158 = vld [vmem:[#allocation3 + $0x50] sm:$0xff]
    %v159 = vld [vmem:[#allocation3 + $0x58] sm:$0xff]
    %v161 = vsel %vm129, %v146, 0
    %163 = vmatpush.msra.mxu0 0.0
    %164 = vmatpush.msra.mxu0 0.0
    %165 = vmatpush.msra.mxu0 0.0
    %166 = vmatpush.msra.mxu0 0.0
    %167 = vmatpush.msra.mxu0 %v159
    %168 = vmatpush.msra.mxu0 %v158
    %169 = vmatpush.msra.mxu0 %v157
    %170 = vmatpush.msra.mxu0 %v156
    %171 = vmatpush.msra.mxu0 %v155
    %172 = vmatpush.msra.mxu0 %v154
    %173 = vmatpush.msra.mxu0 %v153
    %174 = vmatpush.msra.mxu0 %v152
    %175 = vmatpush.msra.mxu0 %v151
    %176 = vmatpush.msra.mxu0 %v150
    %177 = vmatpush.msra.mxu0 %v149
    %178 = vmatpush.msra.mxu0 %v148
    %179 = vmatmul.f32.gmra.mxu0 %v161
    %v180 = vpop.f32.mrf.mxu0
    %v181 = vadd.f32 0.0, %v180
    %182 = vdwg.mxu0
    %v183 = vadd.f32 %v147, %v181
    %184 = vst [vmem:[#allocation2] sm:$0xff] %v183
    // Predicated region
    $region26: #{bert_triplet_classification_head.1} parent=1 // pred_check
      %p185 = pneg %p71
    $region27: #{bert_triplet_classification_head.1} parent=1 // pred_check_branch
      %187 = sbr.rel (%p185) target = $region29
    $region28: #{bert_triplet_classification_head.1} parent=1 // pred_region
      %v188 = vld [vmem:[#allocation2] sm:$0xff]
      %189 = vst [vmem:[%s4] sm:$0xff] %v188
    $region29: #{bert_triplet_classification_head.1} parent=1 // pred_fallthru
      _
    // Predicated region
    $region30: #{bert_triplet_classification_head.1} parent=1 // pred_check
      _
    $region31: #{bert_triplet_classification_head.1} parent=1 // pred_check_branch
      %191 = sbr.rel (0) target = $region33
    $region32: #{bert_triplet_classification_head.1} parent=1 // pred_region
      _
    $region33: #{bert_triplet_classification_head.1} parent=1 // pred_fallthru
      _
    // Predicated region
    $region34: #{bert_triplet_classification_head.1} parent=1 // pred_check
      _
    $region35: #{bert_triplet_classification_head.1} parent=1 // pred_check_branch
      %193 = sbr.rel (0) target = $region37
    $region36: #{bert_triplet_classification_head.1} parent=1 // pred_region
      _
    $region37: #{bert_triplet_classification_head.1} parent=1 // pred_fallthru
      _
    %194 = vsyncpa [#allocation4], 1

</llo_original>
